<compile_context>
chip_gen: v6e
topology: v6e:2x2x1
jax: 0.10.0
libtpu: 0.0.40
codegen_flags: <defaults>
</compile_context>

<pallas_src>
import math
import functools

import jax
import jax.numpy as jnp
from jax.experimental import pallas as pl
from jax.experimental.pallas import tpu as pltpu


_INV_SQRT2 = 1.0 / math.sqrt(2.0)
_TANH_C = math.sqrt(2.0 / math.pi)


def _gelu(h, tanh_approx):
    """GELU in float32. tanh_approx -> EUP tanh (nn.GELU(approximate='tanh'))."""
    if tanh_approx:
        return 0.5 * h * (1.0 + jnp.tanh(_TANH_C * (h + 0.044715 * h * h * h)))
    return 0.5 * h * (1.0 + jax.lax.erf(h * _INV_SQRT2))


# --------------------------------- kernels ----------------------------------
def _mlp_kernel_resident(x_ref, w1_ref, b1_ref, w2_ref, b2_ref, o_ref, *, tanh_gelu):
    """Weights VMEM-resident (constant block index); 1-D grid over row tiles."""
    x = x_ref[...].astype(w1_ref.dtype)          # in-kernel cast, hidden under MXU
    h = jnp.dot(x, w1_ref[...], preferred_element_type=jnp.float32)
    h = _gelu(h + b1_ref[...], tanh_gelu)        # bias + GELU in f32
    # TODO(synk): drop_rate > 0 would need pltpu.prng_seed/prng_random_bits with a
    # program_id-dependent seed; drop_rate=0.0 here -> identity.
    out = jnp.dot(h.astype(w2_ref.dtype), w2_ref[...],
                  preferred_element_type=jnp.float32)
    o_ref[...] = (out + b2_ref[...]).astype(o_ref.dtype)


def _mlp_kernel_tiled(x_ref, w1_ref, b1_ref, w2_ref, b2_ref, o_ref, acc_ref, *,
                      tanh_gelu):
    """Fallback: hidden dim tiled on an 'arbitrary' reduction axis (grid axis 1)."""
    k = pl.program_id(1)
    nk = pl.num_programs(1)

    @pl.when(k == 0)
    def _():
        acc_ref[...] = jnp.zeros_like(acc_ref)

    x = x_ref[...].astype(w1_ref.dtype)
    h = jnp.dot(x, w1_ref[...], preferred_element_type=jnp.float32)
    h = _gelu(h + b1_ref[...], tanh_gelu)
    partial = jnp.dot(h.astype(w2_ref.dtype), w2_ref[...],
                      preferred_element_type=jnp.float32)

    @pl.when(k < nk - 1)
    def _():
        acc_ref[...] += partial

    @pl.when(k == nk - 1)
    def _():
        # fuse final partial product, bias add and cast into the output store
        o_ref[...] = (acc_ref[...] + partial + b2_ref[...]).astype(o_ref.dtype)


# ------------------------------ geometry helpers -----------------------------
def _round_up(x, m):
    return ((x + m - 1) // m) * m


def _pad2d(a, r, c):
    pr, pc = r - a.shape[0], c - a.shape[1]
    if pr or pc:
        a = jnp.pad(a, ((0, pr), (0, pc)))
    return a


def _vmem_capacity_bytes():
    try:
        cap = getattr(pltpu.get_tpu_info(), "vmem_capacity_bytes", None)
        if cap:
            return int(cap)
    except Exception:
        pass
    return 64 * 1024 * 1024  # conservative default (v7x per-TC)


def _tm_candidates(tm_req, rows):
    cap = _round_up(max(rows, 8), 8)
    tm = min(_round_up(max(tm_req, 8), 8), cap)
    out = []
    while True:
        out.append(tm)
        if tm <= 8:
            break
        tm = max(8, _round_up(tm // 2, 8))
    return out


def _th_divisors(h_pad):
    n = h_pad // 128
    return [d * 128 for d in range(n, 0, -1) if n % d == 0]


def _resident_bytes(tm, e_pad, h_pad, x_itm, w_itm, out_itm):
    return (2 * tm * e_pad * x_itm                 # x tiles (double-buffered)
            + 2 * 2 * e_pad * h_pad * w_itm        # W1 + W2 (x2 buffer safety)
            + 2 * (h_pad + e_pad) * 4              # biases (f32)
            + 2 * tm * e_pad * out_itm             # output tiles
            + tm * h_pad * (4 + w_itm)             # hidden intermediate f32 + cast
            + tm * e_pad * 4)                      # fc2 f32 result pre-cast


def _tiled_bytes(tm, th, e_pad, x_itm, w_itm, out_itm):
    return (2 * tm * e_pad * x_itm
            + 2 * e_pad * th * w_itm               # W1 column slice
            + 2 * th * e_pad * w_itm               # W2 row slice
            + 2 * (th + e_pad) * 4
            + 2 * tm * e_pad * out_itm
            + tm * e_pad * 4                       # f32 accumulator scratch
            + tm * th * (4 + w_itm)                # hidden intermediate
            + tm * e_pad * 4)                      # partial f32


def _pick_geometry(rows, e_pad, h_pad, x_itm, w_itm, out_itm, budget, tm_req, th_req):
    tms = _tm_candidates(tm_req, rows)
    # 1) weight-resident variant (W1/W2 DMA'd once per call)
    if th_req is None or th_req >= h_pad:
        for tm in tms:
            if _resident_bytes(tm, e_pad, h_pad, x_itm, w_itm, out_itm) <= budget:
                return "resident", tm, h_pad
    # 2) hidden-tiled fallback (weights streamed once per row tile)
    # NOTE: the W1 (E_pad, th) column slice is a strided DMA; if this path
    # dominates, W1 could be stored pre-transposed as (H, E) instead.
    th_cap = h_pad if th_req is None else max(th_req, 128)
    ths = [t for t in _th_divisors(h_pad) if t <= th_cap] or [128]
    for tm in tms:
        for th in ths:
            if _tiled_bytes(tm, th, e_pad, x_itm, w_itm, out_itm) <= budget:
                return "tiled", tm, th
    return "tiled", tms[-1], ths[-1]


# ------------------------------ public wrappers ------------------------------
def prepare_mlp_params(w1, b1, w2, b2, compute_dtype=jnp.bfloat16):
    """Pad weights to lane-dense multiples of 128 and cast ONCE (hoisted out of
    the per-call path). w1: (E, H), b1: (H,), w2: (H, E), b2: (E,).
    Zero padding is mathematically inert for this MLP."""
    E, H = w1.shape
    assert w2.shape == (H, E) and b1.shape == (H,) and b2.shape == (E,)
    e_pad, h_pad = _round_up(E, 128), _round_up(H, 128)
    w1p = _pad2d(w1.astype(compute_dtype), e_pad, h_pad)
    w2p = _pad2d(w2.astype(compute_dtype), h_pad, e_pad)
    b1p = _pad2d(b1.reshape(1, H).astype(jnp.float32), 1, h_pad)
    b2p = _pad2d(b2.reshape(1, E).astype(jnp.float32), 1, e_pad)
    return w1p, b1p, w2p, b2p


@functools.partial(jax.jit,
                   static_argnames=("tm", "th", "vmem_budget_bytes", "tanh_gelu"))
def mlp_forward(x, w1p, b1p, w2p, b2p, tm=512, th=None,
                vmem_budget_bytes=None, tanh_gelu=False):
    """x: (..., E). w1p/b1p/w2p/b2p: pre-padded params from prepare_mlp_params().
    Returns (..., E) in x.dtype. Matmuls run in the prepared weight dtype
    (default bf16); accumulation, bias adds and GELU are float32."""
    orig_shape = x.shape
    E = orig_shape[-1]
    rows = int(math.prod(orig_shape[:-1])) if len(orig_shape) > 1 else 1
    e_pad, h_pad = w1p.shape
    assert w2p.shape == (h_pad, e_pad) and E <= e_pad

    out_dtype = x.dtype
    x_itm = jnp.dtype(x.dtype).itemsize
    w_itm = jnp.dtype(w1p.dtype).itemsize
    out_itm = jnp.dtype(out_dtype).itemsize

    # Per-TensorCore VMEM budget (64 MiB on v7x, 128 MiB on v5e/v6e) with margin.
    budget = vmem_budget_bytes or min(int(_vmem_capacity_bytes() * 0.7),
                                      96 * 1024 * 1024)

    mode, tm_sel, th_sel = _pick_geometry(rows, e_pad, h_pad, x_itm, w_itm,
                                          out_itm, budget, tm, th)

    rows_pad = _round_up(rows, tm_sel)
    # zero-pad rows/features (no dtype cast here; cast happens inside the kernel)
    x2 = _pad2d(x.reshape(rows, E), rows_pad, e_pad)
    n_row_tiles = rows_pad // tm_sel

    weight_passes = 1 if mode == "resident" else n_row_tiles
    cost = pl.CostEstimate(
        flops=int(4 * rows_pad * e_pad * h_pad),
        transcendentals=int(rows_pad * h_pad),
        bytes_accessed=int(rows_pad * e_pad * (x_itm + out_itm)
                           + weight_passes * (w1p.size + w2p.size) * w_itm
                           + (b1p.size + b2p.size) * 4),
    )

    if mode == "resident":
        kernel = functools.partial(_mlp_kernel_resident, tanh_gelu=tanh_gelu)
        grid_spec = pltpu.PrefetchScalarGridSpec(
            num_scalar_prefetch=0,
            grid=(n_row_tiles,),
            in_specs=[
                pl.BlockSpec((tm_sel, e_pad), lambda i: (i, 0)),   # x rows
                pl.BlockSpec((e_pad, h_pad), lambda i: (0, 0)),    # W1 (resident)
                pl.BlockSpec((1, h_pad), lambda i: (0, 0)),        # b1 (resident)
                pl.BlockSpec((h_pad, e_pad), lambda i: (0, 0)),    # W2 (resident)
                pl.BlockSpec((1, e_pad), lambda i: (0, 0)),        # b2 (resident)
            ],
            out_specs=pl.BlockSpec((tm_sel, e_pad), lambda i: (i, 0)),
        )
        dim_sem = ("parallel",)
    else:
        kernel = functools.partial(_mlp_kernel_tiled, tanh_gelu=tanh_gelu)
        grid_spec = pltpu.PrefetchScalarGridSpec(
            num_scalar_prefetch=0,
            grid=(n_row_tiles, h_pad // th_sel),
            in_specs=[
                pl.BlockSpec((tm_sel, e_pad), lambda i, k: (i, 0)),  # x rows
                pl.BlockSpec((e_pad, th_sel), lambda i, k: (0, k)),  # W1 slice
                pl.BlockSpec((1, th_sel), lambda i, k: (0, k)),      # b1 slice
                pl.BlockSpec((th_sel, e_pad), lambda i, k: (k, 0)),  # W2 slice
                pl.BlockSpec((1, e_pad), lambda i, k: (0, 0)),       # b2
            ],
            out_specs=pl.BlockSpec((tm_sel, e_pad), lambda i, k: (i, 0)),
            scratch_shapes=[pltpu.VMEM((tm_sel, e_pad), jnp.float32)],
        )
        dim_sem = ("parallel", "arbitrary")

    out2 = pl.pallas_call(
        kernel,
        out_shape=jax.ShapeDtypeStruct((rows_pad, e_pad), out_dtype),
        grid_spec=grid_spec,
        compiler_params=pltpu.CompilerParams(
            dimension_semantics=dim_sem,
            vmem_limit_bytes=int(budget)),
        cost_estimate=cost,
    )(x2, w1p, b1p, w2p, b2p)

    return out2[:rows, :E].reshape(orig_shape)


def init_mlp_params(key, embed_dims, mlp_ratio=4.0, dtype=jnp.float32):
    """Deterministic init mimicking nn.Linear default (uniform +-1/sqrt(fan_in)).
    Weights stored as (in, out) — transposed relative to PyTorch's (out, in)."""
    hidden_dims = int(embed_dims * mlp_ratio)
    k1, k2, k3, k4 = jax.random.split(key, 4)
    lim1 = 1.0 / math.sqrt(embed_dims)
    lim2 = 1.0 / math.sqrt(hidden_dims)
    w1 = jax.random.uniform(k1, (embed_dims, hidden_dims), dtype, -lim1, lim1)
    b1 = jax.random.uniform(k2, (hidden_dims,), dtype, -lim1, lim1)
    w2 = jax.random.uniform(k3, (hidden_dims, embed_dims), dtype, -lim2, lim2)
    b2 = jax.random.uniform(k4, (embed_dims,), dtype, -lim2, lim2)
    return w1, b1, w2, b2


if __name__ == "__main__":
    key = jax.random.PRNGKey(0)
    kx, kp = jax.random.split(key)

    def ref_mlp(xx, w1, b1, w2, b2):
        E = xx.shape[-1]
        h = xx.reshape(-1, E) @ w1 + b1
        h = 0.5 * h * (1.0 + jax.lax.erf(h / math.sqrt(2.0)))
        return (h @ w2 + b2).reshape(xx.shape)

    # small ViT-ish shapes: batch=2, seq=8 tokens, embed_dims=32, mlp_ratio=4
    B, N, E = 2, 8, 32
    x = jax.random.normal(kx, (B, N, E), jnp.float32)
    w1, b1, w2, b2 = init_mlp_params(kp, E, mlp_ratio=4.0)
    ref = ref_mlp(x, w1, b1, w2, b2)

    # 1) default path: bf16 matmuls, f32 accumulation, weight-resident
    pb = prepare_mlp_params(w1, b1, w2, b2)                       # bf16 weights
    out_bf16 = jax.block_until_ready(mlp_forward(x, *pb))
    assert jnp.allclose(out_bf16, ref, atol=5e-2, rtol=5e-2), "mismatch (bf16)"

    # 2) exact f32 path (validates numerics vs the PyTorch reference tightly)
    pf = prepare_mlp_params(w1, b1, w2, b2, compute_dtype=jnp.float32)
    out_f32 = jax.block_until_ready(mlp_forward(x, *pf))
    assert jnp.allclose(out_f32, ref, atol=1e-5, rtol=1e-5), "mismatch (f32)"

    # 3) ragged token count (ViT's 197 tokens) exercises the padding path
    x_rag = jax.random.normal(jax.random.PRNGKey(1), (2, 197, E), jnp.float32)
    out_rag = jax.block_until_ready(mlp_forward(x_rag, *pf))
    assert jnp.allclose(out_rag, ref_mlp(x_rag, w1, b1, w2, b2),
                        atol=1e-5, rtol=1e-5), "mismatch (ragged)"

    # 4) forced hidden-dim-tiled (reduction) fallback path: E=64, H=256, th=128
    E2 = 64
    x2 = jax.random.normal(jax.random.PRNGKey(2), (2, 8, E2), jnp.float32)
    w1b, b1b, w2b, b2b = init_mlp_params(jax.random.PRNGKey(3), E2, mlp_ratio=4.0)
    pf2 = prepare_mlp_params(w1b, b1b, w2b, b2b, compute_dtype=jnp.float32)
    out_tiled = jax.block_until_ready(mlp_forward(x2, *pf2, th=128))
    assert jnp.allclose(out_tiled, ref_mlp(x2, w1b, b1b, w2b, b2b),
                        atol=1e-5, rtol=1e-5), "mismatch (tiled)"

    print("KERNEL_OK")
</pallas_src>

<mosaic_0001>
module attributes {stable_mosaic.version = 11 : i64} {
  func.func @_mlp_kernel_resident(%arg0: i32, %arg1: memref<16x128xf32, #tpu.memory_space<vmem>>, %arg2: memref<128x128xbf16, #tpu.memory_space<vmem>>, %arg3: memref<1x128xf32, #tpu.memory_space<vmem>>, %arg4: memref<128x128xbf16, #tpu.memory_space<vmem>>, %arg5: memref<1x128xf32, #tpu.memory_space<vmem>>, %arg6: memref<16x128xf32, #tpu.memory_space<vmem>>) attributes {dimension_semantics = [#tpu.dimension_semantics<parallel>], iteration_bounds = array<i64: 1>, scalar_prefetch = 0 : i64, scratch_operands = 0 : i64, tpu.core_type = #tpu.core_type<tc>, window_params = [{transform_indices = @transform_0, window_bounds = array<i64: 16, 128>}, {pipeline_mode = #tpu.pipeline_mode<synchronous>, transform_indices = @transform_1, window_bounds = array<i64: 128, 128>}, {pipeline_mode = #tpu.pipeline_mode<synchronous>, transform_indices = @transform_2, window_bounds = array<i64: 1, 128>}, {pipeline_mode = #tpu.pipeline_mode<synchronous>, transform_indices = @transform_3, window_bounds = array<i64: 128, 128>}, {pipeline_mode = #tpu.pipeline_mode<synchronous>, transform_indices = @transform_4, window_bounds = array<i64: 1, 128>}, {transform_indices = @transform_5, window_bounds = array<i64: 16, 128>}]} {
    %c0 = arith.constant 0 : index
    %c0_0 = arith.constant 0 : index
    %0 = vector.load %arg1[%c0, %c0_0] : memref<16x128xf32, #tpu.memory_space<vmem>>, vector<16x128xf32>
    %1 = arith.truncf %0 : vector<16x128xf32> to vector<16x128xbf16>
    %c0_1 = arith.constant 0 : index
    %c0_2 = arith.constant 0 : index
    %2 = vector.load %arg2[%c0_1, %c0_2] : memref<128x128xbf16, #tpu.memory_space<vmem>>, vector<128x128xbf16>
    %cst = arith.constant dense<0.000000e+00> : vector<16x128xf32>
    %3 = tpu.matmul %1, %2, %cst {dimension_numbers = #tpu.dot_dimension_numbers<[1], [0], [0], [1], [0, 0, 1, 1], [], []>} : vector<16x128xbf16>, vector<128x128xbf16>, vector<16x128xf32> -> vector<16x128xf32>
    %c0_3 = arith.constant 0 : index
    %c0_4 = arith.constant 0 : index
    %4 = vector.load %arg3[%c0_3, %c0_4] : memref<1x128xf32, #tpu.memory_space<vmem>>, vector<1x128xf32>
    %5 = vector.broadcast %4 : vector<1x128xf32> to vector<16x128xf32>
    %6 = arith.addf %3, %5 : vector<16x128xf32>
    %cst_5 = arith.constant 5.000000e-01 : f32
    %7 = vector.broadcast %cst_5 : f32 to vector<16x128xf32>
    %8 = arith.mulf %7, %6 : vector<16x128xf32>
    %cst_6 = arith.constant 0.707106769 : f32
    %9 = vector.broadcast %cst_6 : f32 to vector<16x128xf32>
    %10 = arith.mulf %6, %9 : vector<16x128xf32>
    %11 = math.erf %10 : vector<16x128xf32>
    %cst_7 = arith.constant 1.000000e+00 : f32
    %12 = vector.broadcast %cst_7 : f32 to vector<16x128xf32>
    %13 = arith.addf %12, %11 : vector<16x128xf32>
    %14 = arith.mulf %8, %13 : vector<16x128xf32>
    %15 = arith.truncf %14 : vector<16x128xf32> to vector<16x128xbf16>
    %c0_8 = arith.constant 0 : index
    %c0_9 = arith.constant 0 : index
    %16 = vector.load %arg4[%c0_8, %c0_9] : memref<128x128xbf16, #tpu.memory_space<vmem>>, vector<128x128xbf16>
    %cst_10 = arith.constant dense<0.000000e+00> : vector<16x128xf32>
    %17 = tpu.matmul %15, %16, %cst_10 {dimension_numbers = #tpu.dot_dimension_numbers<[1], [0], [0], [1], [0, 0, 1, 1], [], []>} : vector<16x128xbf16>, vector<128x128xbf16>, vector<16x128xf32> -> vector<16x128xf32>
    %c0_11 = arith.constant 0 : index
    %c0_12 = arith.constant 0 : index
    %18 = vector.load %arg5[%c0_11, %c0_12] : memref<1x128xf32, #tpu.memory_space<vmem>>, vector<1x128xf32>
    %19 = vector.broadcast %18 : vector<1x128xf32> to vector<16x128xf32>
    %20 = arith.addf %17, %19 : vector<16x128xf32>
    %c0_13 = arith.constant 0 : index
    %c0_14 = arith.constant 0 : index
    %21 = vector.load %arg6[%c0_13, %c0_14] : memref<16x128xf32, #tpu.memory_space<vmem>>, vector<16x128xf32>
    tpu.vector_store %arg6[%c0_13, %c0_14], %20 {strides = array<i32>} : memref<16x128xf32, #tpu.memory_space<vmem>>, vector<16x128xf32>,
    return
  }
  func.func @transform_0(%arg0: i32) -> (i32, i32) {
    %c0_i32 = arith.constant 0 : i32
    %c0_i32_0 = arith.constant 0 : i32
    return %arg0, %c0_i32 : i32, i32
  }
  func.func @transform_1(%arg0: i32) -> (i32, i32) {
    %c0_i32 = arith.constant 0 : i32
    %c0_i32_0 = arith.constant 0 : i32
    %c0_i32_1 = arith.constant 0 : i32
    return %c0_i32, %c0_i32_0 : i32, i32
  }
  func.func @transform_2(%arg0: i32) -> (i32, i32) {
    %c0_i32 = arith.constant 0 : i32
    %c0_i32_0 = arith.constant 0 : i32
    %c0_i32_1 = arith.constant 0 : i32
    return %c0_i32, %c0_i32_0 : i32, i32
  }
  func.func @transform_3(%arg0: i32) -> (i32, i32) {
    %c0_i32 = arith.constant 0 : i32
    %c0_i32_0 = arith.constant 0 : i32
    %c0_i32_1 = arith.constant 0 : i32
    return %c0_i32, %c0_i32_0 : i32, i32
  }
  func.func @transform_4(%arg0: i32) -> (i32, i32) {
    %c0_i32 = arith.constant 0 : i32
    %c0_i32_0 = arith.constant 0 : i32
    %c0_i32_1 = arith.constant 0 : i32
    return %c0_i32, %c0_i32_0 : i32, i32
  }
  func.func @transform_5(%arg0: i32) -> (i32, i32) {
    %c0_i32 = arith.constant 0 : i32
    %c0_i32_0 = arith.constant 0 : i32
    return %arg0, %c0_i32 : i32, i32
  }
}

</mosaic_0001>

<llo_original>
// kernel: mlp_forward.1
$region0: #{mlp_forward.1}
  #allocation0 [shape = 'u32[]', space=smem, size = 0x4, offset = 0x4, fixed_abs, tag = 'smem constant byte address 0x4 - core index']
  #allocation1 [shape = 'u32[144,128]{1,0:T(1,128)}', space=vmem, size = 0x12000, scoped, tag = 'internal scratch']
  %s0 = inlined_call_operand.vmem [shape: f32[16,128], index: 0, kind: input, shape index: {}]
  %s1 = inlined_call_operand.hbm [shape: bf16[128,128], index: 1, kind: input, shape index: {}]
  %s2 = inlined_call_operand.vmem [shape: f32[1,128], index: 2, kind: input, shape index: {}]
  %s3 = inlined_call_operand.hbm [shape: bf16[128,128], index: 3, kind: input, shape index: {}]
  %s4 = inlined_call_operand.vmem [shape: f32[1,128], index: 4, kind: input, shape index: {}]
  %s5 = inlined_call_operand.vmem [shape: f32[16,128], index: 5, kind: output, shape index: {}]
  %s6 = sld [smem:[#allocation0]]
  $region38: #{mlp_forward.1} parent=0
    _
  %s8 = ssub.s32 1, %s6
  %s9 = scalar_select 0, %s8, %s6
  $region1: #{mlp_forward.1} parent=0
    #allocation2 [shape = 'u8[32768]{0}', space=vmem, size = 0x8000, scoped, tag = 'input window, operand 1, single buffered']
    #allocation3 [shape = 's32[1]{0}', space=sflag, size = 0x4, scoped, tag = 'scoped memory for mlp_forward.1']
    #allocation4 [shape = 'u8[32768]{0}', space=vmem, size = 0x8000, scoped, tag = 'input window, operand 3, single buffered']
    #allocation5 [shape = 's32[1]{0}', space=sflag, size = 0x4, scoped, tag = 'scoped memory for mlp_forward.1']
    %10 = vsyncpa [#allocation3], 0
    %11 = vsyncpa [#allocation5], 0
    // Predicated region
    $region2: #{mlp_forward.1} parent=1 // pred_check
      _
    $region3: #{mlp_forward.1} parent=1 // pred_check_branch
      %13 = sbr.rel (0) target = $region5
    $region4: #{mlp_forward.1} parent=1 // pred_region
      _
    $region5: #{mlp_forward.1} parent=1 // pred_fallthru
      _
    // Predicated region
    $region6: #{mlp_forward.1} parent=1 // pred_check
      _
    $region7: #{mlp_forward.1} parent=1 // pred_check_branch
      %15 = sbr.rel (0) target = $region9
    $region8: #{mlp_forward.1} parent=1 // pred_region
      %s17 = ssub.s32 1024, 1024
      %18 = vsyncadd [#allocation3], %s17
      %s19 = sshll.u32 [#allocation2], 4
      %s20 = int_to_ptr.vmem [resolvable:$true] %s19
      %25 = dma.hbm_to_vmem [thread:$0]  %s1, 1024, %s20, [#allocation3], 64, 64, 4
    $region9: #{mlp_forward.1} parent=1 // pred_fallthru
      _
    // Predicated region
    $region10: #{mlp_forward.1} parent=1 // pred_check
      _
    $region11: #{mlp_forward.1} parent=1 // pred_check_branch
      %27 = sbr.rel (0) target = $region13
    $region12: #{mlp_forward.1} parent=1 // pred_region
      _
    $region13: #{mlp_forward.1} parent=1 // pred_fallthru
      _
    // Predicated region
    $region14: #{mlp_forward.1} parent=1 // pred_check
      _
    $region15: #{mlp_forward.1} parent=1 // pred_check_branch
      %29 = sbr.rel (0) target = $region17
    $region16: #{mlp_forward.1} parent=1 // pred_region
      %s31 = ssub.s32 1024, 1024
      %32 = vsyncadd [#allocation5], %s31
      %s33 = sshll.u32 [#allocation4], 4
      %s34 = int_to_ptr.vmem [resolvable:$true] %s33
      %39 = dma.hbm_to_vmem [thread:$0]  %s3, 1024, %s34, [#allocation5], 64, 64, 4
    $region17: #{mlp_forward.1} parent=1 // pred_fallthru
      _
    // Predicated region
    $region18: #{mlp_forward.1} parent=1 // pred_check
      _
    $region19: #{mlp_forward.1} parent=1 // pred_check_branch
      %41 = sbr.rel (0) target = $region21
    $region20: #{mlp_forward.1} parent=1 // pred_region
      _
    $region21: #{mlp_forward.1} parent=1 // pred_fallthru
      _
    // Predicated region
    $region22: #{mlp_forward.1} parent=1 // pred_check
      _
    $region23: #{mlp_forward.1} parent=1 // pred_check_branch
      %43 = sbr.rel (0) target = $region25
    $region24: #{mlp_forward.1} parent=1 // pred_region
      %44 = dma.done [#allocation3], 1024
    $region25: #{mlp_forward.1} parent=1 // pred_fallthru
      _
    // Predicated region
    $region26: #{mlp_forward.1} parent=1 // pred_check
      _
    $region27: #{mlp_forward.1} parent=1 // pred_check_branch
      %46 = sbr.rel (0) target = $region29
    $region28: #{mlp_forward.1} parent=1 // pred_region
      %47 = dma.done [#allocation5], 1024
    $region29: #{mlp_forward.1} parent=1 // pred_fallthru
      _
    %v49 = vld [vmem:[%s0] sm:$0xff]
    %v50 = vld [vmem:[%s0 + $0x8] sm:$0xff]
    %v51 = vpack.c.bf16 %v50, %v49
    %v52 = vld [vmem:[#allocation2] sm:$0xf]
    %v53 = vld [vmem:[#allocation2 + $0x4] sm:$0xf]
    %v54 = vld [vmem:[#allocation2 + $0x8] sm:$0xf]
    %v55 = vld [vmem:[#allocation2 + $0xc] sm:$0xf]
    %v56 = vld [vmem:[#allocation2 + $0x10] sm:$0xf]
    %v57 = vld [vmem:[#allocation2 + $0x14] sm:$0xf]
    %v58 = vld [vmem:[#allocation2 + $0x18] sm:$0xf]
    %v59 = vld [vmem:[#allocation2 + $0x1c] sm:$0xf]
    %v60 = vld [vmem:[#allocation2 + $0x20] sm:$0xf]
    %v61 = vld [vmem:[#allocation2 + $0x24] sm:$0xf]
    %v62 = vld [vmem:[#allocation2 + $0x28] sm:$0xf]
    %v63 = vld [vmem:[#allocation2 + $0x2c] sm:$0xf]
    %v64 = vld [vmem:[#allocation2 + $0x30] sm:$0xf]
    %v65 = vld [vmem:[#allocation2 + $0x34] sm:$0xf]
    %v66 = vld [vmem:[#allocation2 + $0x38] sm:$0xf]
    %v67 = vld [vmem:[#allocation2 + $0x3c] sm:$0xf]
    %v68 = vld [vmem:[%s2] sm:$0x1]
    %v70 = vlaneseq
    %v71 = vshrl.u32 %v70, 7
    %v72 = vsub.s32 0, %v71
    %v73 = vrot.slane %v68, %v72
    %v91 = vunpack.c.l.b16 %v52
    %v92 = vunpack.c.l.b16 %v53
    %v93 = vunpack.c.l.b16 %v54
    %v94 = vunpack.c.l.b16 %v55
    %v95 = vunpack.c.l.b16 %v56
    %v96 = vunpack.c.l.b16 %v57
    %v97 = vunpack.c.l.b16 %v58
    %v98 = vunpack.c.l.b16 %v59
    %v99 = vunpack.c.l.b16 %v60
    %v100 = vunpack.c.l.b16 %v61
    %v101 = vunpack.c.l.b16 %v62
    %v102 = vunpack.c.l.b16 %v63
    %v103 = vunpack.c.l.b16 %v64
    %v104 = vunpack.c.l.b16 %v65
    %v105 = vunpack.c.l.b16 %v66
    %v106 = vunpack.c.l.b16 %v67
    %v107 = vpack.c.b16 %v92, %v91
    %v108 = vpack.c.b16 %v94, %v93
    %v109 = vpack.c.b16 %v96, %v95
    %v110 = vpack.c.b16 %v98, %v97
    %v111 = vpack.c.b16 %v100, %v99
    %v112 = vpack.c.b16 %v102, %v101
    %v113 = vpack.c.b16 %v104, %v103
    %v114 = vpack.c.b16 %v106, %v105
    %123 = vmatprep.subr.bf16.mxu0 0
    %124 = vmatpush1.bf16.msra.mxu0 %v114
    %125 = vmatprep.subr.bf16.mxu0 0
    %126 = vmatpush1.bf16.msra.mxu0 %v113
    %127 = vmatprep.subr.bf16.mxu0 0
    %128 = vmatpush1.bf16.msra.mxu0 %v112
    %129 = vmatprep.subr.bf16.mxu0 0
    %130 = vmatpush1.bf16.msra.mxu0 %v111
    %131 = vmatprep.subr.bf16.mxu0 0
    %132 = vmatpush1.bf16.msra.mxu0 %v110
    %133 = vmatprep.subr.bf16.mxu0 0
    %134 = vmatpush1.bf16.msra.mxu0 %v109
    %135 = vmatprep.subr.bf16.mxu0 0
    %136 = vmatpush1.bf16.msra.mxu0 %v108
    %137 = vmatprep.subr.bf16.mxu0 0
    %138 = vmatpush1.bf16.msra.mxu0 %v107
    %139 = vmatprep.subr.bf16.mxu0 0
    %140 = vmatpush2.bf16.msra.mxu0 0
    %141 = vmatprep.subr.bf16.mxu0 0
    %142 = vmatpush2.bf16.msra.mxu0 0
    %143 = vmatprep.subr.bf16.mxu0 0
    %144 = vmatpush2.bf16.msra.mxu0 0
    %145 = vmatprep.subr.bf16.mxu0 0
    %146 = vmatpush2.bf16.msra.mxu0 0
    %147 = vmatprep.subr.bf16.mxu0 0
    %148 = vmatpush2.bf16.msra.mxu0 0
    %149 = vmatprep.subr.bf16.mxu0 0
    %150 = vmatpush2.bf16.msra.mxu0 0
    %151 = vmatprep.subr.bf16.mxu0 0
    %152 = vmatpush2.bf16.msra.mxu0 0
    %153 = vmatprep.subr.bf16.mxu0 0
    %154 = vmatpush2.bf16.msra.mxu0 0
    %155 = vmatprep.mubr.bf16.mxu0 0
    %156 = vmatmul.mubr.bf16.gmra.mxu0 %v51
    %v157 = vpop.f32.mrf.mxu0
    %v158 = vadd.f32 %v73, %v157
    %v159 = vpop.f32.mrf.mxu0
    %v160 = vpop.f32.mrf.mxu0
    %v161 = vadd.f32 %v73, %v160
    %v162 = vpop.f32.mrf.mxu0
    %163 = vdwg.mxu0
    %v164 = vmul.f32 %v158, 0.5
    %v165 = vmul.f32 %v161, 0.5
    %v166 = vmul.f32 %v158, 0.70710677
    %v167 = vmul.f32 %v161, 0.70710677
    %v168 = verf.f32.pop %v166
    %v169 = verf.f32.pop %v167
    %v170 = vadd.f32 %v168, 1.0
    %v171 = vadd.f32 %v169, 1.0
    %v172 = vmul.f32 %v164, %v170
    %v173 = vmul.f32 %v165, %v171
    %v174 = vpack.c.bf16 %v173, %v172
    %v175 = vld [vmem:[#allocation4] sm:$0xf]
    %v176 = vld [vmem:[#allocation4 + $0x4] sm:$0xf]
    %v177 = vld [vmem:[#allocation4 + $0x8] sm:$0xf]
    %v178 = vld [vmem:[#allocation4 + $0xc] sm:$0xf]
    %v179 = vld [vmem:[#allocation4 + $0x10] sm:$0xf]
    %v180 = vld [vmem:[#allocation4 + $0x14] sm:$0xf]
    %v181 = vld [vmem:[#allocation4 + $0x18] sm:$0xf]
    %v182 = vld [vmem:[#allocation4 + $0x1c] sm:$0xf]
    %v183 = vld [vmem:[#allocation4 + $0x20] sm:$0xf]
    %v184 = vld [vmem:[#allocation4 + $0x24] sm:$0xf]
    %v185 = vld [vmem:[#allocation4 + $0x28] sm:$0xf]
    %v186 = vld [vmem:[#allocation4 + $0x2c] sm:$0xf]
    %v187 = vld [vmem:[#allocation4 + $0x30] sm:$0xf]
    %v188 = vld [vmem:[#allocation4 + $0x34] sm:$0xf]
    %v189 = vld [vmem:[#allocation4 + $0x38] sm:$0xf]
    %v190 = vld [vmem:[#allocation4 + $0x3c] sm:$0xf]
    %v191 = vld [vmem:[%s4] sm:$0x1]
    %v193 = vlaneseq
    %v194 = vshrl.u32 %v193, 7
    %v195 = vsub.s32 0, %v194
    %v196 = vrot.slane %v191, %v195
    %v214 = vunpack.c.l.b16 %v175
    %v215 = vunpack.c.l.b16 %v176
    %v216 = vunpack.c.l.b16 %v177
    %v217 = vunpack.c.l.b16 %v178
    %v218 = vunpack.c.l.b16 %v179
    %v219 = vunpack.c.l.b16 %v180
    %v220 = vunpack.c.l.b16 %v181
    %v221 = vunpack.c.l.b16 %v182
    %v222 = vunpack.c.l.b16 %v183
    %v223 = vunpack.c.l.b16 %v184
    %v224 = vunpack.c.l.b16 %v185
    %v225 = vunpack.c.l.b16 %v186
    %v226 = vunpack.c.l.b16 %v187
    %v227 = vunpack.c.l.b16 %v188
    %v228 = vunpack.c.l.b16 %v189
    %v229 = vunpack.c.l.b16 %v190
    %v230 = vpack.c.b16 %v215, %v214
    %v231 = vpack.c.b16 %v217, %v216
    %v232 = vpack.c.b16 %v219, %v218
    %v233 = vpack.c.b16 %v221, %v220
    %v234 = vpack.c.b16 %v223, %v222
    %v235 = vpack.c.b16 %v225, %v224
    %v236 = vpack.c.b16 %v227, %v226
    %v237 = vpack.c.b16 %v229, %v228
    %246 = vmatprep.subr.bf16.mxu0 0
    %247 = vmatpush1.bf16.msra.mxu0 %v237
    %248 = vmatprep.subr.bf16.mxu0 0
    %249 = vmatpush1.bf16.msra.mxu0 %v236
    %250 = vmatprep.subr.bf16.mxu0 0
    %251 = vmatpush1.bf16.msra.mxu0 %v235
    %252 = vmatprep.subr.bf16.mxu0 0
    %253 = vmatpush1.bf16.msra.mxu0 %v234
    %254 = vmatprep.subr.bf16.mxu0 0
    %255 = vmatpush1.bf16.msra.mxu0 %v233
    %256 = vmatprep.subr.bf16.mxu0 0
    %257 = vmatpush1.bf16.msra.mxu0 %v232
    %258 = vmatprep.subr.bf16.mxu0 0
    %259 = vmatpush1.bf16.msra.mxu0 %v231
    %260 = vmatprep.subr.bf16.mxu0 0
    %261 = vmatpush1.bf16.msra.mxu0 %v230
    %262 = vmatprep.subr.bf16.mxu0 0
    %263 = vmatpush2.bf16.msra.mxu0 0
    %264 = vmatprep.subr.bf16.mxu0 0
    %265 = vmatpush2.bf16.msra.mxu0 0
    %266 = vmatprep.subr.bf16.mxu0 0
    %267 = vmatpush2.bf16.msra.mxu0 0
    %268 = vmatprep.subr.bf16.mxu0 0
    %269 = vmatpush2.bf16.msra.mxu0 0
    %270 = vmatprep.subr.bf16.mxu0 0
    %271 = vmatpush2.bf16.msra.mxu0 0
    %272 = vmatprep.subr.bf16.mxu0 0
    %273 = vmatpush2.bf16.msra.mxu0 0
    %274 = vmatprep.subr.bf16.mxu0 0
    %275 = vmatpush2.bf16.msra.mxu0 0
    %276 = vmatprep.subr.bf16.mxu0 0
    %277 = vmatpush2.bf16.msra.mxu0 0
    %278 = vmatprep.mubr.bf16.mxu0 0
    %279 = vmatmul.mubr.bf16.gmra.mxu0 %v174
    %v280 = vpop.f32.mrf.mxu0
    %v281 = vadd.f32 %v196, %v280
    %v282 = vpop.f32.mrf.mxu0
    %v283 = vpop.f32.mrf.mxu0
    %v284 = vadd.f32 %v196, %v283
    %v285 = vpop.f32.mrf.mxu0
    %286 = vdwg.mxu0
    %287 = vst [vmem:[%s5] sm:$0xff] %v281
    %288 = vst [vmem:[%s5 + $0x8] sm:$0xff] %v284
    // Predicated region
    $region30: #{mlp_forward.1} parent=1 // pred_check
      _
    $region31: #{mlp_forward.1} parent=1 // pred_check_branch
      %290 = sbr.rel (0) target = $region33
    $region32: #{mlp_forward.1} parent=1 // pred_region
      _
    $region33: #{mlp_forward.1} parent=1 // pred_fallthru
      _
    // Predicated region
    $region34: #{mlp_forward.1} parent=1 // pred_check
      _
    $region35: #{mlp_forward.1} parent=1 // pred_check_branch
      %292 = sbr.rel (0) target = $region37
    $region36: #{mlp_forward.1} parent=1 // pred_region
      _
    $region37: #{mlp_forward.1} parent=1 // pred_fallthru
      _
    %293 = vsyncpa [#allocation3], 1
    %294 = vsyncpa [#allocation5], 1

</llo_original>
